<compile_context>
chip_gen: v7x
topology: tpu7x:2x2x1
jax: 0.10.0
libtpu: 0.0.40
codegen_flags: <defaults>
</compile_context>

<pallas_src>
import jax
import jax.numpy as jnp
import numpy as np
from jax.experimental import pallas as pl
from jax.experimental.pallas import tpu as pltpu

# ----------------------------- model config ---------------------------------
STACK_NUM = 2
BLOCK_NUM = 3
LOOPBACK = 5          # loopback_window
HORIZON = 2           # future_horizen
HIDDEN = 8            # fc_layers = [8, 8, 8, 8]
LAYERS_PER_BLOCK = 6  # h1, h2, h3, h4, y_hat, x_hat
N_BLOCKS = STACK_NUM * BLOCK_NUM

IN_PAD = 8            # LOOPBACK + 1 (bias row) padded to the sublane multiple
OUT_PAD = 8           # HORIZON + LOOPBACK padded to the sublane multiple

# per-block (in, out) shapes, original (unpadded) sizes
_LAYER_SHAPES = [
    (LOOPBACK, HIDDEN),   # h1
    (HIDDEN, HIDDEN),     # h2
    (HIDDEN, HIDDEN),     # h3
    (HIDDEN, HIDDEN),     # h4
    (HIDDEN, HORIZON),    # y_hat
    (HIDDEN, LOOPBACK),   # x_hat
]


def _round_up(n, m):
    return ((n + m - 1) // m) * m


# ------------------------------- kernel -------------------------------------
def _affine_kernel(wt_ref, xt_ref, out_ref):
    """One fused affine map of the whole N-BEATS forward.

    wt_ref : (OUT_PAD, IN_PAD)  stationary pre-composed weights (out, in)
    xt_ref : (IN_PAD, TB)       batch tile, batch on the LANE axis;
                                row LOOPBACK is the constant-1 bias row
    out_ref: (OUT_PAD, TB)      rows [0:HORIZON]          = y_sum^T
                                rows [HORIZON:HORIZON+L]  = final x_hat^T
    """
    out_ref[...] = jnp.dot(wt_ref[...], xt_ref[...],
                           preferred_element_type=jnp.float32)


@jax.jit
def nbeats_forward(x, w_t):
    """x: (B, LOOPBACK) f32.  w_t: (OUT_PAD, IN_PAD) composed weights.

    Returns (y_sum (B, HORIZON), x_hat (B, LOOPBACK)).
    """
    B = x.shape[0]
    # Lane-dense batch tile: multiple of 128, capped so tiles stay tiny
    # relative to every generation's VMEM (8*TB*4 B = 32 KiB at TB=1024).
    TB = min(1024, _round_up(B, 128))
    Bp = _round_up(B, TB)

    # Transposed, padded, bias-augmented input: (IN_PAD, Bp), batch on lanes.
    xt = jnp.zeros((IN_PAD, Bp), jnp.float32)
    xt = xt.at[:LOOPBACK, :B].set(x.T)
    xt = xt.at[LOOPBACK, :B].set(1.0)   # folded-bias row

    out_t = pl.pallas_call(
        _affine_kernel,
        out_shape=jax.ShapeDtypeStruct((OUT_PAD, Bp), jnp.float32),
        grid=(Bp // TB,),
        in_specs=[
            pl.BlockSpec((OUT_PAD, IN_PAD), lambda i: (0, 0)),  # weights stay resident
            pl.BlockSpec((IN_PAD, TB), lambda i: (0, i)),
        ],
        out_specs=pl.BlockSpec((OUT_PAD, TB), lambda i: (0, i)),
        compiler_params=pltpu.CompilerParams(
            dimension_semantics=("parallel",)),   # v7x: shard batch tiles over both TCs
    )(w_t, xt)

    y_sum = out_t[:HORIZON, :B].T
    x_hat = out_t[HORIZON:HORIZON + LOOPBACK, :B].T
    return y_sum, x_hat


# --------------------------- parameter setup --------------------------------
def init_params(key):
    """Deterministically init all 36 Linear layers (PyTorch-style bounds)."""
    raw_w, raw_b = [], []
    for _ in range(N_BLOCKS):
        for (din, dout) in _LAYER_SHAPES:
            key, kw, kb = jax.random.split(key, 3)
            bound = 1.0 / np.sqrt(din)
            raw_w.append(
                jax.random.uniform(kw, (din, dout), jnp.float32, -bound, bound))
            raw_b.append(
                jax.random.uniform(kb, (dout,), jnp.float32, -bound, bound))
    return raw_w, raw_b


def compose_affine(raw_w, raw_b):
    """Fold the entire activation-free forward into one affine map.

    Follows the PyTorch aliasing semantics exactly: inside each stack the
    residual loses every block's x_hat, and after the stack the LAST block's
    x_hat is subtracted a second time (the tensor is aliased).  Composition is
    done in float64 for accuracy, then cast to f32.

    Returns W^T of shape (OUT_PAD, IN_PAD) such that
        concat([y_sum, x_hat], -1)^T = W^T @ [x, 1]^T
    """
    L, H = LOOPBACK, HORIZON
    R = np.eye(L, dtype=np.float64)        # residual = x @ R + r_c
    r_c = np.zeros((L,), np.float64)
    Ay = np.zeros((L, H), np.float64)      # y_sum = x @ Ay + cy
    cy = np.zeros((H,), np.float64)
    Ax = np.zeros((L, L), np.float64)      # last block's x_hat = x @ Ax + cx
    cx = np.zeros((L,), np.float64)

    for s in range(STACK_NUM):
        for blk in range(BLOCK_NUM):
            base = (s * BLOCK_NUM + blk) * LAYERS_PER_BLOCK
            Ah, ch = R.copy(), r_c.copy()
            for l in range(4):             # h1..h4 trunk (no activations)
                w = np.asarray(raw_w[base + l], np.float64)
                b = np.asarray(raw_b[base + l], np.float64)
                ch = ch @ w + b
                Ah = Ah @ w
            wy = np.asarray(raw_w[base + 4], np.float64)
            by = np.asarray(raw_b[base + 4], np.float64)
            wx = np.asarray(raw_w[base + 5], np.float64)
            bx = np.asarray(raw_b[base + 5], np.float64)
            Ay += Ah @ wy
            cy += ch @ wy + by
            Ax = Ah @ wx
            cx = ch @ wx + bx
            R = R - Ax                     # BlockStack: x_hat_prev -= x_hat
            r_c = r_c - cx
        R = R - Ax                         # NbeatsModel: aliased tensor, so the
        r_c = r_c - cx                     # last block's x_hat subtracted again

    # Pack:  [x, 1] @ W = [y_sum, x_hat];  kernel wants W^T (out, in) layout.
    W = np.zeros((IN_PAD, OUT_PAD), np.float64)
    W[:L, :H] = Ay
    W[L, :H] = cy
    W[:L, H:H + L] = Ax
    W[L, H:H + L] = cx
    return jnp.asarray(W.T.astype(np.float32))


def reference_forward(x, raw_w, raw_b):
    """Pure-JAX layer-by-layer reference reproducing the PyTorch (aliased
    in-place) semantics in float32."""
    r = x
    y_sum = jnp.zeros((x.shape[0], HORIZON), jnp.float32)
    xh = None
    for s in range(STACK_NUM):
        for blk in range(BLOCK_NUM):
            base = (s * BLOCK_NUM + blk) * LAYERS_PER_BLOCK
            h = r
            for l in range(4):
                h = h @ raw_w[base + l] + raw_b[base + l]
            y = h @ raw_w[base + 4] + raw_b[base + 4]
            xh = h @ raw_w[base + 5] + raw_b[base + 5]
            r = r - xh
            y_sum = y_sum + y
        r = r - xh
    return y_sum, xh


# --------------------------------- main --------------------------------------
if __name__ == "__main__":
    key = jax.random.PRNGKey(0)
    key, kx = jax.random.split(key)

    B = 8
    x = jax.random.normal(kx, (B, LOOPBACK), jnp.float32)

    raw_w, raw_b = init_params(key)
    w_t = compose_affine(raw_w, raw_b)

    y_sum, x_hat = nbeats_forward(x, w_t)
    jax.block_until_ready((y_sum, x_hat))

    y_ref, xh_ref = reference_forward(x, raw_w, raw_b)
    assert y_sum.shape == (B, HORIZON) and x_hat.shape == (B, LOOPBACK)
    np.testing.assert_allclose(np.asarray(y_sum), np.asarray(y_ref),
                               rtol=1e-4, atol=1e-4)
    np.testing.assert_allclose(np.asarray(x_hat), np.asarray(xh_ref),
                               rtol=1e-4, atol=1e-4)

    print("KERNEL_OK")
</pallas_src>

<mosaic_0001>
module attributes {stable_mosaic.version = 11 : i64} {
  func.func @_affine_kernel(%arg0: i32, %arg1: memref<8x8xf32, #tpu.memory_space<vmem>>, %arg2: memref<8x128xf32, #tpu.memory_space<vmem>>, %arg3: memref<8x128xf32, #tpu.memory_space<vmem>>) attributes {dimension_semantics = [#tpu.dimension_semantics<parallel>], iteration_bounds = array<i64: 1>, scalar_prefetch = 0 : i64, scratch_operands = 0 : i64, tpu.core_type = #tpu.core_type<tc>, window_params = [{pipeline_mode = #tpu.pipeline_mode<synchronous>, transform_indices = @transform_0, window_bounds = array<i64: 8, 8>}, {transform_indices = @transform_1, window_bounds = array<i64: 8, 128>}, {transform_indices = @transform_2, window_bounds = array<i64: 8, 128>}]} {
    %c0 = arith.constant 0 : index
    %c0_0 = arith.constant 0 : index
    %0 = vector.load %arg1[%c0, %c0_0] : memref<8x8xf32, #tpu.memory_space<vmem>>, vector<8x8xf32>
    %c0_1 = arith.constant 0 : index
    %c0_2 = arith.constant 0 : index
    %1 = vector.load %arg2[%c0_1, %c0_2] : memref<8x128xf32, #tpu.memory_space<vmem>>, vector<8x128xf32>
    %cst = arith.constant dense<0.000000e+00> : vector<8x128xf32>
    %2 = tpu.matmul %0, %1, %cst {dimension_numbers = #tpu.dot_dimension_numbers<[1], [0], [0], [1], [0, 0, 1, 1], [], []>} : vector<8x8xf32>, vector<8x128xf32>, vector<8x128xf32> -> vector<8x128xf32>
    %c0_3 = arith.constant 0 : index
    %c0_4 = arith.constant 0 : index
    %3 = vector.load %arg3[%c0_3, %c0_4] : memref<8x128xf32, #tpu.memory_space<vmem>>, vector<8x128xf32>
    tpu.vector_store %arg3[%c0_3, %c0_4], %2 {strides = array<i32>} : memref<8x128xf32, #tpu.memory_space<vmem>>, vector<8x128xf32>,
    return
  }
  func.func @transform_0(%arg0: i32) -> (i32, i32) {
    %c0_i32 = arith.constant 0 : i32
    %c0_i32_0 = arith.constant 0 : i32
    %c0_i32_1 = arith.constant 0 : i32
    return %c0_i32, %c0_i32_0 : i32, i32
  }
  func.func @transform_1(%arg0: i32) -> (i32, i32) {
    %c0_i32 = arith.constant 0 : i32
    %c0_i32_0 = arith.constant 0 : i32
    return %c0_i32, %arg0 : i32, i32
  }
  func.func @transform_2(%arg0: i32) -> (i32, i32) {
    %c0_i32 = arith.constant 0 : i32
    %c0_i32_0 = arith.constant 0 : i32
    return %c0_i32, %arg0 : i32, i32
  }
}

</mosaic_0001>

<llo_original>
// kernel: nbeats_forward.1
$region0: #{nbeats_forward.1}
  #allocation0 [shape = 'u32[]', space=smem, size = 0x4, offset = 0x4, fixed_abs, tag = 'smem constant byte address 0x4 - core index']
  #allocation1 [shape = 'u32[144,128]{1,0:T(1,128)}', space=vmem, size = 0x12000, scoped, tag = 'internal scratch']
  %s0 = inlined_call_operand.vmem [shape: f32[8,8], index: 0, kind: input, shape index: {}]
  %s1 = inlined_call_operand.vmem [shape: f32[8,128], index: 1, kind: input, shape index: {}]
  %s2 = inlined_call_operand.vmem [shape: f32[8,128], index: 2, kind: output, shape index: {}]
  %s3 = sld [smem:[#allocation0]]
  $region18: #{nbeats_forward.1} parent=0
    _
  %s5 = ssub.s32 1, %s3
  %s6 = scalar_select 0, %s5, %s3
  // Predicated region
  $region2: #{nbeats_forward.1} parent=0 // pred_check
    _
  $region3: #{nbeats_forward.1} parent=0 // pred_check_branch
    %8 = sbr.rel (0) target = $region5
  $region4: #{nbeats_forward.1} parent=0 // pred_region
    _
  $region5: #{nbeats_forward.1} parent=0 // pred_fallthru
    _
  // Predicated region
  $region6: #{nbeats_forward.1} parent=0 // pred_check
    _
  $region7: #{nbeats_forward.1} parent=0 // pred_check_branch
    %10 = sbr.rel (0) target = $region9
  $region8: #{nbeats_forward.1} parent=0 // pred_region
    _
  $region9: #{nbeats_forward.1} parent=0 // pred_fallthru
    _
  %v11 = vld [vmem:[%s0] sm:$0xff]
  %v12 = vld [vmem:[%s1] sm:$0xff]
  %vm13 = vcmask 64512
  %v15 = vsel %vm13, %v11, 0
  %17 = vmatprep.subr.mxu0 0.0
  %18 = vmatpush1.msra.mxu0 %v12
  %19 = vmatprep.subr.mxu0 0.0
  %20 = vmatpush1.msra.mxu0 0.0
  %21 = vmatprep.subr.mxu0 0.0
  %22 = vmatpush1.msra.mxu0 0.0
  %23 = vmatprep.subr.mxu0 0.0
  %24 = vmatpush1.msra.mxu0 0.0
  %25 = vmatprep.subr.mxu0 0.0
  %26 = vmatpush1.msra.mxu0 0.0
  %27 = vmatprep.subr.mxu0 0.0
  %28 = vmatpush1.msra.mxu0 0.0
  %29 = vmatprep.subr.mxu0 0.0
  %30 = vmatpush1.msra.mxu0 0.0
  %31 = vmatprep.subr.mxu0 0.0
  %32 = vmatpush1.msra.mxu0 0.0
  %33 = vmatprep.subr.mxu0 0.0
  %34 = vmatpush1.msra.mxu0 0.0
  %35 = vmatprep.subr.mxu0 0.0
  %36 = vmatpush1.msra.mxu0 0.0
  %37 = vmatprep.subr.mxu0 0.0
  %38 = vmatpush1.msra.mxu0 0.0
  %39 = vmatprep.subr.mxu0 0.0
  %40 = vmatpush1.msra.mxu0 0.0
  %41 = vmatprep.subr.mxu0 0.0
  %42 = vmatpush1.msra.mxu0 0.0
  %43 = vmatprep.subr.mxu0 0.0
  %44 = vmatpush1.msra.mxu0 0.0
  %45 = vmatprep.subr.mxu0 0.0
  %46 = vmatpush1.msra.mxu0 0.0
  %47 = vmatprep.subr.mxu0 0.0
  %48 = vmatpush1.msra.mxu0 0.0
  %49 = vmatprep.subr.mxu0 0.0
  %50 = vmatpush1.msra.mxu0 0.0
  %51 = vmatprep.subr.mxu0 0.0
  %52 = vmatpush1.msra.mxu0 0.0
  %53 = vmatprep.subr.mxu0 0.0
  %54 = vmatpush1.msra.mxu0 0.0
  %55 = vmatprep.subr.mxu0 0.0
  %56 = vmatpush1.msra.mxu0 0.0
  %57 = vmatprep.subr.mxu0 0.0
  %58 = vmatpush1.msra.mxu0 0.0
  %59 = vmatprep.subr.mxu0 0.0
  %60 = vmatpush1.msra.mxu0 0.0
  %61 = vmatprep.subr.mxu0 0.0
  %62 = vmatpush1.msra.mxu0 0.0
  %63 = vmatprep.subr.mxu0 0.0
  %64 = vmatpush1.msra.mxu0 0.0
  %65 = vmatprep.subr.mxu0 0.0
  %66 = vmatpush1.msra.mxu0 0.0
  %67 = vmatprep.subr.mxu0 0.0
  %68 = vmatpush1.msra.mxu0 0.0
  %69 = vmatprep.subr.mxu0 0.0
  %70 = vmatpush1.msra.mxu0 0.0
  %71 = vmatprep.subr.mxu0 0.0
  %72 = vmatpush1.msra.mxu0 0.0
  %73 = vmatprep.subr.mxu0 0.0
  %74 = vmatpush1.msra.mxu0 0.0
  %75 = vmatprep.subr.mxu0 0.0
  %76 = vmatpush1.msra.mxu0 0.0
  %77 = vmatprep.subr.mxu0 0.0
  %78 = vmatpush1.msra.mxu0 0.0
  %79 = vmatprep.subr.mxu0 0.0
  %80 = vmatpush1.msra.mxu0 0.0
  %81 = vmatprep.mubr.f32.mxu0 0.0
  %82 = vmatmul.mubr.f32.gmra.mrb[0].mxu0 %v15
  %v83 = vpop.f32.mrb[0].mxu0
  %v84 = vadd.f32 0.0, %v83
  %v85 = vpop.f32.mrb[0].mxu0
  %86 = vdwg.mxu0
  %87 = vst [vmem:[%s2] sm:$0xff] %v84
  // Predicated region
  $region10: #{nbeats_forward.1} parent=0 // pred_check
    _
  $region11: #{nbeats_forward.1} parent=0 // pred_check_branch
    %89 = sbr.rel (0) target = $region13
  $region12: #{nbeats_forward.1} parent=0 // pred_region
    _
  $region13: #{nbeats_forward.1} parent=0 // pred_fallthru
    _
  // Predicated region
  $region14: #{nbeats_forward.1} parent=0 // pred_check
    _
  $region15: #{nbeats_forward.1} parent=0 // pred_check_branch
    %91 = sbr.rel (0) target = $region17
  $region16: #{nbeats_forward.1} parent=0 // pred_region
    _
  $region17: #{nbeats_forward.1} parent=0 // pred_fallthru
    _

</llo_original>
